<compile_context>
chip_gen: v5e
topology: v5e:2x2
jax: 0.10.0
libtpu: 0.0.40
codegen_flags: <defaults>
</compile_context>

<pallas_src>
import functools

import jax
import jax.numpy as jnp
import numpy as np
from jax.experimental import pallas as pl
from jax.experimental.pallas import tpu as pltpu

_LANE = 128


def _moe_kernel(used_ref, x_ref, rw_ref, w1_ref, b1_ref, w2_ref, b2_ref, o_ref):
    bi = pl.program_id(0)
    ei = pl.program_id(1)

    # First expert step: init the VMEM-resident output tile (accumulated in place).
    @pl.when(ei == 0)
    def _():
        o_ref[...] = jnp.zeros_like(o_ref)

    # Skip both MXU matmuls when no row in this batch tile routed to expert e
    # (its routing weights are exactly zero).  Weights are still streamed by the
    # BlockSpec pipeline; compacting the expert list via the scalar-prefetch
    # index_maps would also skip that DMA (see TODO in the header).
    @pl.when(used_ref[bi, ei] > 0)
    def _():
        xb = x_ref[...]                                              # (tb, Dp) bf16
        h = jnp.dot(xb, w1_ref[0],
                    preferred_element_type=jnp.float32) + b1_ref[0]  # (tb, Hp) f32
        h = jnp.maximum(h, 0.0)                                      # ReLU
        oe = jnp.dot(h.astype(jnp.bfloat16), w2_ref[0],
                     preferred_element_type=jnp.float32) + b2_ref[0] # (tb, Op) f32
        o_ref[...] += rw_ref[0] * oe                                 # rw_ref[0]: (tb, 1)


def _round_up(n, m):
    return ((n + m - 1) // m) * m


def _divisors(n):
    out = []
    i = 1
    while i * i <= n:
        if n % i == 0:
            out.append(i)
            if i != n // i:
                out.append(n // i)
        i += 1
    return sorted(out)


def _hw_plan():
    """Generation-aware batch-tile target and VMEM budget."""
    kind = ""
    try:
        kind = jax.devices()[0].device_kind.lower()
    except Exception:
        pass
    try:
        vmem_phys = int(pltpu.get_tpu_info().vmem_capacity_bytes)
    except Exception:
        vmem_phys = (64 << 20) if ("v7" in kind or "tpu7" in kind) else (128 << 20)
    headroom = 12 << 20  # leave room for compiler-internal scratch
    if "v7" in kind or "tpu7" in kind or vmem_phys <= (64 << 20):
        # v7x: 64 MiB/TC, 2 TCs/chip, ridge ~310 flop/B -> tb >= ~384-512, nb >= 2.
        return dict(tb_target=512, vmem_cap=max(vmem_phys - headroom, 24 << 20), n_tc=2)
    if "v6" in kind:
        # v6e: 128 MiB VMEM, ridge ~650 flop/B -> tb >= ~640.
        return dict(tb_target=640, vmem_cap=min(112 << 20, vmem_phys - headroom), n_tc=1)
    # v5e / older / unknown: ridge ~240 flop/B.
    return dict(tb_target=256, vmem_cap=min(100 << 20, vmem_phys - headroom), n_tc=1)


def _pick_tb(B, plan_bytes, tb_target, vmem_cap, n_tc):
    """Largest legal batch tile <= target that fits VMEM; keep all TCs busy on v7x."""
    legal = [t for t in _divisors(B) if t % 8 == 0 or t == B]
    fits = [t for t in legal if plan_bytes(t) <= int(vmem_cap * 0.8)]
    cands = [t for t in fits if t <= tb_target] or fits or legal
    if n_tc > 1:
        multi = [t for t in cands if B // t >= n_tc]
        if multi:
            return max(multi)
    return max(cands)


def _routing_dense(x_f32, wg_f32, k):
    """Gate -> top-k -> softmax in f32 XLA; scatter to a dense (B, E) weight matrix."""
    gate = x_f32 @ wg_f32                                   # (B, E)
    vals, idxs = jax.lax.top_k(gate, k)                     # (B, k)
    w = jax.nn.softmax(vals, axis=-1)                       # (B, k)
    B, E = gate.shape
    rw = jnp.zeros((B, E), jnp.float32)
    rw = rw.at[jnp.arange(B)[:, None], idxs].set(w)         # zero for unselected experts
    return rw


@functools.partial(jax.jit, static_argnames=("k", "tb"))
def moe_topk_forward(x, params, k, tb=None):
    wg, w1, b1, w2, b2 = params
    B, D = x.shape
    E = wg.shape[1]
    H = w1.shape[2]
    O = w2.shape[2]

    x_f32 = x.astype(jnp.float32)
    # Routing hoisted out of the kernel (f32 for bit-faithful top-k selection).
    rw = _routing_dense(x_f32, wg.astype(jnp.float32), k)   # (B, E) f32, dense

    # Pad contraction / lane dims to multiples of 128 (zero padding contributes 0).
    Dp = _round_up(D, _LANE)
    Hp = _round_up(H, _LANE)
    Op = _round_up(O, _LANE)

    x_bf = x_f32.astype(jnp.bfloat16)
    w1b = w1.astype(jnp.bfloat16)
    w2b = w2.astype(jnp.bfloat16)
    b1f = b1.astype(jnp.float32)
    b2f = b2.astype(jnp.float32)
    if Dp != D:
        x_bf = jnp.pad(x_bf, ((0, 0), (0, Dp - D)))
        w1b = jnp.pad(w1b, ((0, 0), (0, Dp - D), (0, 0)))
    if Hp != H:
        w1b = jnp.pad(w1b, ((0, 0), (0, 0), (0, Hp - H)))
        b1f = jnp.pad(b1f, ((0, 0), (0, 0), (0, Hp - H)))
        w2b = jnp.pad(w2b, ((0, 0), (0, Hp - H), (0, 0)))
    if Op != O:
        w2b = jnp.pad(w2b, ((0, 0), (0, 0), (0, Op - O)))
        b2f = jnp.pad(b2f, ((0, 0), (0, 0), (0, Op - O)))

    plan = _hw_plan()

    def plan_bytes(t):
        # Per-grid-step VMEM footprint (double-buffered pipeline blocks).
        w_bytes = Dp * Hp * 2 + Hp * 4 + Hp * Op * 2 + Op * 4   # one expert's weights
        return (2 * t * Dp * 2        # x tile (bf16)
                + 2 * t * 4           # routing-weight slab
                + 2 * w_bytes         # expert weights
                + 2 * t * Op * 4)     # output tile (f32)

    if tb is None:
        tb = _pick_tb(B, plan_bytes, plan["tb_target"], plan["vmem_cap"], plan["n_tc"])
    assert B % tb == 0
    nb = B // tb

    # Expert-major routing weights so the BlockSpec hands the kernel exactly the
    # (tb, 1) column for the current expert — no in-kernel mask/reduce needed.
    rw_t = rw.T.reshape(E, B, 1)
    # Per-(batch-tile, expert) usage flags for the scalar-prefetch skip.
    used = jnp.any(rw.reshape(nb, tb, E) > 0, axis=1).astype(jnp.int32)   # (nb, E)

    vmem_limit = int(min(plan["vmem_cap"],
                         max(int(plan_bytes(tb) * 1.5) + (2 << 20), 32 << 20)))

    out = pl.pallas_call(
        _moe_kernel,
        out_shape=jax.ShapeDtypeStruct((B, Op), jnp.float32),
        grid_spec=pltpu.PrefetchScalarGridSpec(
            num_scalar_prefetch=1,
            grid=(nb, E),
            in_specs=[
                pl.BlockSpec((tb, Dp), lambda i, e, u: (i, 0)),       # x batch tile (bf16)
                pl.BlockSpec((1, tb, 1), lambda i, e, u: (e, i, 0)),  # routing col of expert e
                pl.BlockSpec((1, Dp, Hp), lambda i, e, u: (e, 0, 0)), # expert e fc1 weight
                pl.BlockSpec((1, 1, Hp), lambda i, e, u: (e, 0, 0)),  # expert e fc1 bias
                pl.BlockSpec((1, Hp, Op), lambda i, e, u: (e, 0, 0)), # expert e fc2 weight
                pl.BlockSpec((1, 1, Op), lambda i, e, u: (e, 0, 0)),  # expert e fc2 bias
            ],
            out_specs=pl.BlockSpec((tb, Op), lambda i, e, u: (i, 0)),
        ),
        compiler_params=pltpu.CompilerParams(
            dimension_semantics=("parallel", "arbitrary"),
            vmem_limit_bytes=vmem_limit),
    )(used, x_bf, rw_t, w1b, b1f, w2b, b2f)
    return out[:, :O]


def moe_topk_reference(x, params, k):
    """Pure-JAX reference mirroring the PyTorch forward (all f32)."""
    wg, w1, b1, w2, b2 = params
    gate = x @ wg                                                  # (B, E)
    topk_vals, topk_idxs = jax.lax.top_k(gate, k)                  # (B, k)
    topk_w = jax.nn.softmax(topk_vals, axis=-1)                    # (B, k)
    h = jax.nn.relu(jnp.einsum('bd,edh->beh', x, w1) + b1[:, 0, :][None])
    eo = jnp.einsum('beh,eho->beo', h, w2) + b2[:, 0, :][None]     # (B, E, O)
    sel = jnp.take_along_axis(eo, topk_idxs[..., None], axis=1)    # (B, k, O)
    return jnp.sum(sel * topk_w[..., None], axis=1)                # (B, O)


if __name__ == "__main__":
    B, D, E, K, H, O = 8, 16, 4, 2, 32, 8   # batch, input_dim, experts, top-k, hidden, out_dim

    key = jax.random.PRNGKey(0)
    ks = jax.random.split(key, 6)
    x = jax.random.normal(ks[0], (B, D), jnp.float32)
    wg = jax.random.normal(ks[1], (D, E), jnp.float32) * 0.1
    w1 = jax.random.normal(ks[2], (E, D, H), jnp.float32) * 0.1
    b1 = jax.random.normal(ks[3], (E, 1, H), jnp.float32) * 0.1
    w2 = jax.random.normal(ks[4], (E, H, O), jnp.float32) * 0.1
    b2 = jax.random.normal(ks[5], (E, 1, O), jnp.float32) * 0.1
    params = (wg, w1, b1, w2, b2)

    out = moe_topk_forward(x, params, k=K)
    jax.block_until_ready(out)

    ref = moe_topk_reference(x, params, K)
    assert out.shape == (B, O)
    # bf16 expert matmuls in the kernel (f32 accumulation) -> loosened tolerance
    np.testing.assert_allclose(np.asarray(out), np.asarray(ref), rtol=2e-2, atol=2e-2)
    print("KERNEL_OK")
</pallas_src>

<mosaic_0001>
module attributes {stable_mosaic.version = 11 : i64} {
  func.func @_moe_kernel(%arg0: i32, %arg1: i32, %arg2: memref<1x4xi32, #tpu.memory_space<smem>>, %arg3: memref<8x128xbf16, #tpu.memory_space<vmem>>, %arg4: memref<1x8x1xf32, #tpu.memory_space<vmem>>, %arg5: memref<1x128x128xbf16, #tpu.memory_space<vmem>>, %arg6: memref<1x1x128xf32, #tpu.memory_space<vmem>>, %arg7: memref<1x128x128xbf16, #tpu.memory_space<vmem>>, %arg8: memref<1x1x128xf32, #tpu.memory_space<vmem>>, %arg9: memref<8x128xf32, #tpu.memory_space<vmem>>) attributes {dimension_semantics = [#tpu.dimension_semantics<parallel>, #tpu.dimension_semantics<arbitrary>], iteration_bounds = array<i64: 1, 4>, scalar_prefetch = 1 : i64, scratch_operands = 0 : i64, tpu.core_type = #tpu.core_type<tc>, window_params = [{transform_indices = @transform_0, window_bounds = array<i64: 8, 128>}, {transform_indices = @transform_1, window_bounds = array<i64: 1, 8, 1>}, {transform_indices = @transform_2, window_bounds = array<i64: 1, 128, 128>}, {transform_indices = @transform_3, window_bounds = array<i64: 1, 1, 128>}, {transform_indices = @transform_4, window_bounds = array<i64: 1, 128, 128>}, {transform_indices = @transform_5, window_bounds = array<i64: 1, 1, 128>}, {transform_indices = @transform_6, window_bounds = array<i64: 8, 128>}]} {
    %c0_i32 = arith.constant 0 : i32
    %0 = arith.cmpi eq, %arg1, %c0_i32 : i32
    %1 = arith.extui %0 : i1 to i32
    %c0_i32_0 = arith.constant 0 : i32
    %2 = arith.cmpi ne, %1, %c0_i32_0 : i32
    scf.if %2 {
      %cst = arith.constant 0.000000e+00 : f32
      %9 = vector.broadcast %cst : f32 to vector<8x128xf32>
      %c0 = arith.constant 0 : index
      %c0_3 = arith.constant 0 : index
      %10 = vector.load %arg9[%c0, %c0_3] : memref<8x128xf32, #tpu.memory_space<vmem>>, vector<8x128xf32>
      tpu.vector_store %arg9[%c0, %c0_3], %9 {strides = array<i32>} : memref<8x128xf32, #tpu.memory_space<vmem>>, vector<8x128xf32>,
    } else {
    }
    %3 = arith.index_cast %arg0 : i32 to index
    %4 = arith.index_cast %arg1 : i32 to index
    %5 = memref.load %arg2[%3, %4] : memref<1x4xi32, #tpu.memory_space<smem>>
    %c0_i32_1 = arith.constant 0 : i32
    %6 = arith.cmpi sgt, %5, %c0_i32_1 : i32
    %7 = arith.extui %6 : i1 to i32
    %c0_i32_2 = arith.constant 0 : i32
    %8 = arith.cmpi ne, %7, %c0_i32_2 : i32
    scf.if %8 {
      %c0 = arith.constant 0 : index
      %c0_3 = arith.constant 0 : index
      %9 = vector.load %arg3[%c0, %c0_3] : memref<8x128xbf16, #tpu.memory_space<vmem>>, vector<8x128xbf16>
      %c0_4 = arith.constant 0 : index
      %c0_5 = arith.constant 0 : index
      %c0_6 = arith.constant 0 : index
      %10 = vector.load %arg5[%c0_4, %c0_5, %c0_6] : memref<1x128x128xbf16, #tpu.memory_space<vmem>>, vector<1x128x128xbf16>
      %11 = vector.shape_cast %10 : vector<1x128x128xbf16> to vector<128x128xbf16>
      %cst = arith.constant dense<0.000000e+00> : vector<8x128xf32>
      %12 = tpu.matmul %9, %11, %cst {dimension_numbers = #tpu.dot_dimension_numbers<[1], [0], [0], [1], [0, 0, 1, 1], [], []>} : vector<8x128xbf16>, vector<128x128xbf16>, vector<8x128xf32> -> vector<8x128xf32>
      %c0_7 = arith.constant 0 : index
      %c0_8 = arith.constant 0 : index
      %c0_9 = arith.constant 0 : index
      %13 = vector.load %arg6[%c0_7, %c0_8, %c0_9] : memref<1x1x128xf32, #tpu.memory_space<vmem>>, vector<1x1x128xf32>
      %14 = vector.shape_cast %13 : vector<1x1x128xf32> to vector<1x128xf32>
      %15 = vector.broadcast %14 : vector<1x128xf32> to vector<8x128xf32>
      %16 = arith.addf %12, %15 : vector<8x128xf32>
      %cst_10 = arith.constant 0.000000e+00 : f32
      %17 = vector.broadcast %cst_10 : f32 to vector<8x128xf32>
      %18 = arith.maximumf %16, %17 : vector<8x128xf32>
      %19 = arith.truncf %18 : vector<8x128xf32> to vector<8x128xbf16>
      %c0_11 = arith.constant 0 : index
      %c0_12 = arith.constant 0 : index
      %c0_13 = arith.constant 0 : index
      %20 = vector.load %arg7[%c0_11, %c0_12, %c0_13] : memref<1x128x128xbf16, #tpu.memory_space<vmem>>, vector<1x128x128xbf16>
      %21 = vector.shape_cast %20 : vector<1x128x128xbf16> to vector<128x128xbf16>
      %cst_14 = arith.constant dense<0.000000e+00> : vector<8x128xf32>
      %22 = tpu.matmul %19, %21, %cst_14 {dimension_numbers = #tpu.dot_dimension_numbers<[1], [0], [0], [1], [0, 0, 1, 1], [], []>} : vector<8x128xbf16>, vector<128x128xbf16>, vector<8x128xf32> -> vector<8x128xf32>
      %c0_15 = arith.constant 0 : index
      %c0_16 = arith.constant 0 : index
      %c0_17 = arith.constant 0 : index
      %23 = vector.load %arg8[%c0_15, %c0_16, %c0_17] : memref<1x1x128xf32, #tpu.memory_space<vmem>>, vector<1x1x128xf32>
      %24 = vector.shape_cast %23 : vector<1x1x128xf32> to vector<1x128xf32>
      %25 = vector.broadcast %24 : vector<1x128xf32> to vector<8x128xf32>
      %26 = arith.addf %22, %25 : vector<8x128xf32>
      %c0_18 = arith.constant 0 : index
      %c0_19 = arith.constant 0 : index
      %27 = vector.load %arg9[%c0_18, %c0_19] : memref<8x128xf32, #tpu.memory_space<vmem>>, vector<8x128xf32>
      %c0_20 = arith.constant 0 : index
      %c0_21 = arith.constant 0 : index
      %c0_22 = arith.constant 0 : index
      %28 = vector.load %arg4[%c0_20, %c0_21, %c0_22] : memref<1x8x1xf32, #tpu.memory_space<vmem>>, vector<1x8x1xf32>
      %29 = vector.shape_cast %28 : vector<1x8x1xf32> to vector<8x1xf32>
      %30 = vector.broadcast %29 : vector<8x1xf32> to vector<8x128xf32>
      %31 = arith.mulf %30, %26 : vector<8x128xf32>
      %32 = arith.addf %27, %31 : vector<8x128xf32>
      %c0_23 = arith.constant 0 : index
      %c0_24 = arith.constant 0 : index
      %33 = vector.load %arg9[%c0_23, %c0_24] : memref<8x128xf32, #tpu.memory_space<vmem>>, vector<8x128xf32>
      tpu.vector_store %arg9[%c0_23, %c0_24], %32 {strides = array<i32>} : memref<8x128xf32, #tpu.memory_space<vmem>>, vector<8x128xf32>,
    } else {
    }
    return
  }
  func.func @transform_0(%arg0: i32, %arg1: i32, %arg2: memref<1x4xi32, #tpu.memory_space<smem>>) -> (i32, i32) {
    %c0_i32 = arith.constant 0 : i32
    %c0_i32_0 = arith.constant 0 : i32
    return %arg0, %c0_i32 : i32, i32
  }
  func.func @transform_1(%arg0: i32, %arg1: i32, %arg2: memref<1x4xi32, #tpu.memory_space<smem>>) -> (i32, i32, i32) {
    %c0_i32 = arith.constant 0 : i32
    %c0_i32_0 = arith.constant 0 : i32
    return %arg1, %arg0, %c0_i32 : i32, i32, i32
  }
  func.func @transform_2(%arg0: i32, %arg1: i32, %arg2: memref<1x4xi32, #tpu.memory_space<smem>>) -> (i32, i32, i32) {
    %c0_i32 = arith.constant 0 : i32
    %c0_i32_0 = arith.constant 0 : i32
    %c0_i32_1 = arith.constant 0 : i32
    return %arg1, %c0_i32, %c0_i32_0 : i32, i32, i32
  }
  func.func @transform_3(%arg0: i32, %arg1: i32, %arg2: memref<1x4xi32, #tpu.memory_space<smem>>) -> (i32, i32, i32) {
    %c0_i32 = arith.constant 0 : i32
    %c0_i32_0 = arith.constant 0 : i32
    %c0_i32_1 = arith.constant 0 : i32
    return %arg1, %c0_i32, %c0_i32_0 : i32, i32, i32
  }
  func.func @transform_4(%arg0: i32, %arg1: i32, %arg2: memref<1x4xi32, #tpu.memory_space<smem>>) -> (i32, i32, i32) {
    %c0_i32 = arith.constant 0 : i32
    %c0_i32_0 = arith.constant 0 : i32
    %c0_i32_1 = arith.constant 0 : i32
    return %arg1, %c0_i32, %c0_i32_0 : i32, i32, i32
  }
  func.func @transform_5(%arg0: i32, %arg1: i32, %arg2: memref<1x4xi32, #tpu.memory_space<smem>>) -> (i32, i32, i32) {
    %c0_i32 = arith.constant 0 : i32
    %c0_i32_0 = arith.constant 0 : i32
    %c0_i32_1 = arith.constant 0 : i32
    return %arg1, %c0_i32, %c0_i32_0 : i32, i32, i32
  }
  func.func @transform_6(%arg0: i32, %arg1: i32, %arg2: memref<1x4xi32, #tpu.memory_space<smem>>) -> (i32, i32) {
    %c0_i32 = arith.constant 0 : i32
    %c0_i32_0 = arith.constant 0 : i32
    return %arg0, %c0_i32 : i32, i32
  }
}

</mosaic_0001>

<llo_original>
// kernel: moe_topk_forward.1
$region0: #{moe_topk_forward.1}
  #allocation0 [shape = 'u32[]', space=smem, size = 0x4, offset = 0x4, fixed_abs, tag = 'smem constant byte address 0x4 - core index']
  #allocation1 [shape = 'u32[72,128]{1,0:T(1,128)}', space=vmem, size = 0x9000, scoped, tag = 'internal scratch']
  #allocation2 [shape = 's32[1]{0}', space=sflag, size = 0x4, scoped, tag = 'scoped memory for moe_topk_forward.1']
  #allocation3 [shape = 'u8[512]{0}', space=smem, size = 0x200, scoped, tag = 'prefetched SMEM operand 0']
  %s0 = inlined_call_operand.vmem [shape: s32[1,4], index: 0, kind: input, shape index: {}]
  %s1 = inlined_call_operand.vmem [shape: bf16[8,128], index: 1, kind: input, shape index: {}]
  %s2 = inlined_call_operand.vmem [shape: f32[4,8,1], index: 2, kind: input, shape index: {}]
  %s3 = inlined_call_operand.vmem [shape: bf16[4,128,128], index: 3, kind: input, shape index: {}]
  %s4 = inlined_call_operand.vmem [shape: f32[4,1,128], index: 4, kind: input, shape index: {}]
  %s5 = inlined_call_operand.vmem [shape: bf16[4,128,128], index: 5, kind: input, shape index: {}]
  %s6 = inlined_call_operand.vmem [shape: f32[4,1,128], index: 6, kind: input, shape index: {}]
  %s7 = inlined_call_operand.hbm [shape: f32[8,128], index: 7, kind: output, shape index: {}]
  %s8 = sld [smem:[#allocation0]]
  $region65: #{moe_topk_forward.1} parent=0
    _
  %s10 = ssub.s32 1, %s8
  %s11 = scalar_select 0, %s10, %s8
  %s13 = sshll.u32 %s0, 4
  %s14 = int_to_ptr.vmem [resolvable:$true] %s13
  %16 = dma.vmem_to_smem %s14, 16, [#allocation3], [#allocation2]
  %18 = dma.done [#allocation2], 16
  %19 = sfence
  $region1: #{moe_topk_forward.1} parent=0
    #allocation4 [shape = 'u8[4096]{0}', space=vmem, size = 0x1000, scoped, tag = 'output window, operand 0, single buffered']
    #allocation5 [shape = 's32[2]{0}', space=sflag, size = 0x8, scoped, tag = 'scoped memory for moe_topk_forward.1']
    %20 = vsyncpa [#allocation5], 0
    loop: start=0, step=1, limit=6
    $region2: #{moe_topk_forward.1} parent=1 // loop_pre_header
      _
    $region3: #{moe_topk_forward.1} parent=1 // loop_header
      %s22 = sphi 0, %s26
      %p23 = scmp.ge.s32.totalorder %s22, 6
      %s29 = sphi 0, %s41
      %s30 = sphi 0, %s37
      %s31 = sphi 0, %s29
      %s32 = sphi 0, %s30
      %s33 = sphi 0, %s31
      %s34 = sphi 0, %s32
      %s44 = sphi 0, %s46
      %s47 = sphi 0, %s44
      %s48 = sphi 0, %s47
      %s64 = sphi 0, %s48
      %s72 = sphi 0, %s74
      %s75 = sphi 0, %s72
      %s76 = sphi 0, %s75
      %s92 = sphi 0, %s76
      %s98 = sphi 0, %s100
      %s101 = sphi 0, %s98
      %s102 = sphi 0, %s101
      %s118 = sphi 0, %s102
      %s124 = sphi 0, %s126
      %s127 = sphi 0, %s124
      %s128 = sphi 0, %s127
      %s144 = sphi 0, %s128
      %s150 = sphi 0, %s152
      %s153 = sphi 0, %s150
      %s154 = sphi 0, %s153
      %s170 = sphi 0, %s154
      %s176 = sphi 0, %s178
      %s179 = sphi 0, %s176
      %s180 = sphi 0, %s179
      %s196 = sphi 0, %s180
      %s202 = sphi 0, %s204
      %s205 = sphi 0, %s202
      %s206 = sphi 0, %s205
      %s222 = sphi 0, %s206
    $region4: #{moe_topk_forward.1} parent=1 // loop_header_branch
      %25 = sbr.rel (%p23) target = $region8
    $region5: #{moe_topk_forward.1} parent=1 // loop_body
      %s27 = ssub.s32 %s22, 1
      %s28 = ssub.s32 %s22, 2
      %s35 = sadd.s32 1, %s30
      %p36 = scmp.ge.s32.totalorder %s35, 4
      %s37 = scalar_select %p36, 0, %s35
      %s38 = sadd.s32 1, %s29
      %s39 = scalar_select %p36, %s38, %s29
      %p40 = scmp.ge.s32.totalorder %s39, 1
      %s41 = scalar_select %p40, 0, %s39
      %s42 = ssub.s32 %s29, %s41
      %p43 = scmp.eq.s32.totalorder %s42, 0
      %s45 = sadd.s32 %s44, 1
      %s46 = scalar_select %p43, %s44, %s45
      %p49 = pneg %p43
      %p50 = scmp.eq.s32.totalorder %s22, 3
      %p51 = por %p49, %p50
      %p52 = scmp.ne.s32.totalorder %s44, %s47
      %p53 = scmp.eq.s32.totalorder %s22, 0
      %p54 = por %p52, %p53
      %p55 = scmp.ne.s32.totalorder %s44, %s47
      %p56 = scmp.eq.s32.totalorder %s27, 3
      %p57 = por %p55, %p56
      %p58 = scmp.ne.s32.totalorder %s47, %s48
      %p59 = scmp.eq.s32.totalorder %s27, 0
      %p60 = por %p58, %p59
      %p61 = scmp.ne.s32.totalorder %s47, %s48
      %p62 = scmp.eq.s32.totalorder %s28, 3
      %p63 = por %p61, %p62
      %p65 = scmp.ne.s32.totalorder %s48, %s64
      %p66 = scmp.eq.s32.totalorder %s28, 0
      %p67 = por %p65, %p66
      %s68 = ssub.s32 %s30, %s37
      %s69 = ssub.s32 %s29, %s41
      %s70 = sor.u32 %s68, %s69
      %p71 = scmp.eq.s32.totalorder %s70, 0
      %s73 = sadd.s32 %s72, 1
      %s74 = scalar_select %p71, %s72, %s73
      %p77 = pneg %p71
      %p78 = scmp.eq.s32.totalorder %s22, 3
      %p79 = por %p77, %p78
      %p80 = scmp.ne.s32.totalorder %s72, %s75
      %p81 = scmp.eq.s32.totalorder %s22, 0
      %p82 = por %p80, %p81
      %p83 = scmp.ne.s32.totalorder %s72, %s75
      %p84 = scmp.eq.s32.totalorder %s27, 3
      %p85 = por %p83, %p84
      %p86 = scmp.ne.s32.totalorder %s75, %s76
      %p87 = scmp.eq.s32.totalorder %s27, 0
      %p88 = por %p86, %p87
      %p89 = scmp.ne.s32.totalorder %s75, %s76
      %p90 = scmp.eq.s32.totalorder %s28, 3
      %p91 = por %p89, %p90
      %p93 = scmp.ne.s32.totalorder %s76, %s92
      %p94 = scmp.eq.s32.totalorder %s28, 0
      %p95 = por %p93, %p94
      %s96 = ssub.s32 %s30, %s37
      %p97 = scmp.eq.s32.totalorder %s96, 0
      %s99 = sadd.s32 %s98, 1
      %s100 = scalar_select %p97, %s98, %s99
      %p103 = pneg %p97
      %p104 = scmp.eq.s32.totalorder %s22, 3
      %p105 = por %p103, %p104
      %p106 = scmp.ne.s32.totalorder %s98, %s101
      %p107 = scmp.eq.s32.totalorder %s22, 0
      %p108 = por %p106, %p107
      %p109 = scmp.ne.s32.totalorder %s98, %s101
      %p110 = scmp.eq.s32.totalorder %s27, 3
      %p111 = por %p109, %p110
      %p112 = scmp.ne.s32.totalorder %s101, %s102
      %p113 = scmp.eq.s32.totalorder %s27, 0
      %p114 = por %p112, %p113
      %p115 = scmp.ne.s32.totalorder %s101, %s102
      %p116 = scmp.eq.s32.totalorder %s28, 3
      %p117 = por %p115, %p116
      %p119 = scmp.ne.s32.totalorder %s102, %s118
      %p120 = scmp.eq.s32.totalorder %s28, 0
      %p121 = por %p119, %p120
      %s122 = ssub.s32 %s30, %s37
      %p123 = scmp.eq.s32.totalorder %s122, 0
      %s125 = sadd.s32 %s124, 1
      %s126 = scalar_select %p123, %s124, %s125
      %p129 = pneg %p123
      %p130 = scmp.eq.s32.totalorder %s22, 3
      %p131 = por %p129, %p130
      %p132 = scmp.ne.s32.totalorder %s124, %s127
      %p133 = scmp.eq.s32.totalorder %s22, 0
      %p134 = por %p132, %p133
      %p135 = scmp.ne.s32.totalorder %s124, %s127
      %p136 = scmp.eq.s32.totalorder %s27, 3
      %p137 = por %p135, %p136
      %p138 = scmp.ne.s32.totalorder %s127, %s128
      %p139 = scmp.eq.s32.totalorder %s27, 0
      %p140 = por %p138, %p139
      %p141 = scmp.ne.s32.totalorder %s127, %s128
      %p142 = scmp.eq.s32.totalorder %s28, 3
      %p143 = por %p141, %p142
      %p145 = scmp.ne.s32.totalorder %s128, %s144
      %p146 = scmp.eq.s32.totalorder %s28, 0
      %p147 = por %p145, %p146
      %s148 = ssub.s32 %s30, %s37
      %p149 = scmp.eq.s32.totalorder %s148, 0
      %s151 = sadd.s32 %s150, 1
      %s152 = scalar_select %p149, %s150, %s151
      %p155 = pneg %p149
      %p156 = scmp.eq.s32.totalorder %s22, 3
      %p157 = por %p155, %p156
      %p158 = scmp.ne.s32.totalorder %s150, %s153
      %p159 = scmp.eq.s32.totalorder %s22, 0
      %p160 = por %p158, %p159
      %p161 = scmp.ne.s32.totalorder %s150, %s153
      %p162 = scmp.eq.s32.totalorder %s27, 3
      %p163 = por %p161, %p162
      %p164 = scmp.ne.s32.totalorder %s153, %s154
      %p165 = scmp.eq.s32.totalorder %s27, 0
      %p166 = por %p164, %p165
      %p167 = scmp.ne.s32.totalorder %s153, %s154
      %p168 = scmp.eq.s32.totalorder %s28, 3
      %p169 = por %p167, %p168
      %p171 = scmp.ne.s32.totalorder %s154, %s170
      %p172 = scmp.eq.s32.totalorder %s28, 0
      %p173 = por %p171, %p172
      %s174 = ssub.s32 %s30, %s37
      %p175 = scmp.eq.s32.totalorder %s174, 0
      %s177 = sadd.s32 %s176, 1
      %s178 = scalar_select %p175, %s176, %s177
      %p181 = pneg %p175
      %p182 = scmp.eq.s32.totalorder %s22, 3
      %p183 = por %p181, %p182
      %p184 = scmp.ne.s32.totalorder %s176, %s179
      %p185 = scmp.eq.s32.totalorder %s22, 0
      %p186 = por %p184, %p185
      %p187 = scmp.ne.s32.totalorder %s176, %s179
      %p188 = scmp.eq.s32.totalorder %s27, 3
      %p189 = por %p187, %p188
      %p190 = scmp.ne.s32.totalorder %s179, %s180
      %p191 = scmp.eq.s32.totalorder %s27, 0
      %p192 = por %p190, %p191
      %p193 = scmp.ne.s32.totalorder %s179, %s180
      %p194 = scmp.eq.s32.totalorder %s28, 3
      %p195 = por %p193, %p194
      %p197 = scmp.ne.s32.totalorder %s180, %s196
      %p198 = scmp.eq.s32.totalorder %s28, 0
      %p199 = por %p197, %p198
      %s200 = ssub.s32 %s29, %s41
      %p201 = scmp.eq.s32.totalorder %s200, 0
      %s203 = sadd.s32 %s202, 1
      %s204 = scalar_select %p201, %s202, %s203
      %p207 = pneg %p201
      %p208 = scmp.eq.s32.totalorder %s22, 3
      %p209 = por %p207, %p208
      %p210 = scmp.ne.s32.totalorder %s202, %s205
      %p211 = scmp.eq.s32.totalorder %s22, 0
      %p212 = por %p210, %p211
      %p213 = scmp.ne.s32.totalorder %s202, %s205
      %p214 = scmp.eq.s32.totalorder %s27, 3
      %p215 = por %p213, %p214
      %p216 = scmp.ne.s32.totalorder %s205, %s206
      %p217 = scmp.eq.s32.totalorder %s27, 0
      %p218 = por %p216, %p217
      %p219 = scmp.ne.s32.totalorder %s205, %s206
      %p220 = scmp.eq.s32.totalorder %s28, 3
      %p221 = por %p219, %p220
      %p223 = scmp.ne.s32.totalorder %s206, %s222
      %p224 = scmp.eq.s32.totalorder %s28, 0
      %p225 = por %p223, %p224
      %p226 = scmp.le.s32.totalorder 1, %s22
      %p227 = scmp.lt.s32.totalorder %s22, 5
      %p228 = pnand %p226, %p227
      %p229 = pneg %p228
      // Predicated region
      $region9: #{moe_topk_forward.1} parent=5 // pred_check
        _
      $region10: #{moe_topk_forward.1} parent=5 // pred_check_branch
        %231 = sbr.rel (%p228) target = $region12
      $region11: #{moe_topk_forward.1} parent=5 // pred_region
        %s232 = ssub.s32 %s22, 1
        // Predicated region
        $region13: #{moe_topk_forward.1} parent=11 // pred_check
          %p233 = pneg %p60
        $region14: #{moe_topk_forward.1} parent=11 // pred_check_branch
          %235 = sbr.rel (%p233) target = $region16
        $region15: #{moe_topk_forward.1} parent=11 // pred_region
          %p236 = scmp.lt.s32.totalorder %s31, 0
          %s237 = scalar_select %p236, %s31, 0
          %s238 = smul.addr %s237, 4
          %s239 = scalar_lea.vmem %s1, %s238
        $region16: #{moe_topk_forward.1} parent=11 // pred_fallthru
          _
      $region12: #{moe_topk_forward.1} parent=5 // pred_fallthru
        _
      %p240 = scmp.lt.s32.totalorder %s22, 4
      // Predicated region
      $region17: #{moe_topk_forward.1} parent=5 // pred_check
        %p241 = pneg %p240
      $region18: #{moe_topk_forward.1} parent=5 // pred_check_branch
        %243 = sbr.rel (%p241) target = $region20
      $region19: #{moe_topk_forward.1} parent=5 // pred_region
        // Predicated region
        $region21: #{moe_topk_forward.1} parent=19 // pred_check
          %p244 = pneg %p82
        $region22: #{moe_topk_forward.1} parent=19 // pred_check_branch
          %246 = sbr.rel (%p244) target = $region24
        $region23: #{moe_topk_forward.1} parent=19 // pred_region
          %p247 = scmp.lt.s32.totalorder %s30, 3
          %s248 = scalar_select %p247, %s30, 3
          %p249 = scmp.lt.s32.totalorder %s29, 0
          %s250 = scalar_select %p249, %s29, 0
          %s251 = sadd.s32 %s250, %s248
          %s252 = smul.addr %s251, 8
          %s253 = scalar_lea.vmem %s2, %s252
        $region24: #{moe_topk_forward.1} parent=19 // pred_fallthru
          _
        // Predicated region
        $region25: #{moe_topk_forward.1} parent=19 // pred_check
          %p254 = pneg %p108
        $region26: #{moe_topk_forward.1} parent=19 // pred_check_branch
          %256 = sbr.rel (%p254) target = $region28
        $region27: #{moe_topk_forward.1} parent=19 // pred_region
          %p257 = scmp.lt.s32.totalorder %s30, 3
          %s258 = scalar_select %p257, %s30, 3
          %s259 = smul.addr %s258, 16
          %s260 = smul.addr %s259, 4
          %s261 = scalar_lea.vmem %s3, %s260
        $region28: #{moe_topk_forward.1} parent=19 // pred_fallthru
          _
        // Predicated region
        $region29: #{moe_topk_forward.1} parent=19 // pred_check
          %p262 = pneg %p134
        $region30: #{moe_topk_forward.1} parent=19 // pred_check_branch
          %264 = sbr.rel (%p262) target = $region32
        $region31: #{moe_topk_forward.1} parent=19 // pred_region
          %p265 = scmp.lt.s32.totalorder %s30, 3
          %s266 = scalar_select %p265, %s30, 3
          %s267 = scalar_lea.vmem %s4, %s266
        $region32: #{moe_topk_forward.1} parent=19 // pred_fallthru
          _
        // Predicated region
        $region33: #{moe_topk_forward.1} parent=19 // pred_check
          %p268 = pneg %p160
        $region34: #{moe_topk_forward.1} parent=19 // pred_check_branch
          %270 = sbr.rel (%p268) target = $region36
        $region35: #{moe_topk_forward.1} parent=19 // pred_region
          %p271 = scmp.lt.s32.totalorder %s30, 3
          %s272 = scalar_select %p271, %s30, 3
          %s273 = smul.addr %s272, 16
          %s274 = smul.addr %s273, 4
          %s275 = scalar_lea.vmem %s5, %s274
        $region36: #{moe_topk_forward.1} parent=19 // pred_fallthru
          _
        // Predicated region
        $region37: #{moe_topk_forward.1} parent=19 // pred_check
          %p276 = pneg %p186
        $region38: #{moe_topk_forward.1} parent=19 // pred_check_branch
          %278 = sbr.rel (%p276) target = $region40
        $region39: #{moe_topk_forward.1} parent=19 // pred_region
          %p279 = scmp.lt.s32.totalorder %s30, 3
          %s280 = scalar_select %p279, %s30, 3
          %s281 = scalar_lea.vmem %s6, %s280
        $region40: #{moe_topk_forward.1} parent=19 // pred_fallthru
          _
      $region20: #{moe_topk_forward.1} parent=5 // pred_fallthru
        _
      %p282 = scmp.le.s32.totalorder 1, %s22
      %p283 = scmp.lt.s32.totalorder %s22, 5
      %p284 = pnand %p282, %p283
      %p285 = pneg %p284
      // Predicated region
      $region41: #{moe_topk_forward.1} parent=5 // pred_check
        _
      $region42: #{moe_topk_forward.1} parent=5 // pred_check_branch
        %287 = sbr.rel (%p284) target = $region44
      $region43: #{moe_topk_forward.1} parent=5 // pred_region
        %s288 = ssub.s32 %s22, 1
        %p289 = scmp.lt.s32.totalorder %s31, 0
        %s290 = scalar_select %p289, %s31, 0
        %s291 = smul.addr %s290, 4
        %s292 = scalar_lea.vmem %s1, %s291
        %p293 = pneg %p60
        %p294 = pneg %p57
        %p295 = scmp.lt.s32.totalorder %s32, 3
        %s296 = scalar_select %p295, %s32, 3
        %p297 = scmp.lt.s32.totalorder %s31, 0
        %s298 = scalar_select %p297, %s31, 0
        %s299 = sadd.s32 %s298, %s296
        %s300 = smul.addr %s299, 8
        %s301 = scalar_lea.vmem %s2, %s300
        %p302 = pneg %p88
        %p303 = pneg %p85
        %p304 = scmp.lt.s32.totalorder %s32, 3
        %s305 = scalar_select %p304, %s32, 3
        %s306 = smul.addr %s305, 16
        %s307 = smul.addr %s306, 4
        %s308 = scalar_lea.vmem %s3, %s307
        %p309 = pneg %p114
        %p310 = pneg %p111
        %p311 = scmp.lt.s32.totalorder %s32, 3
        %s312 = scalar_select %p311, %s32, 3
        %s313 = scalar_lea.vmem %s4, %s312
        %p314 = pneg %p140
        %p315 = pneg %p137
        %p316 = scmp.lt.s32.totalorder %s32, 3
        %s317 = scalar_select %p316, %s32, 3
        %s318 = smul.addr %s317, 16
        %s319 = smul.addr %s318, 4
        %s320 = scalar_lea.vmem %s5, %s319
        %p321 = pneg %p166
        %p322 = pneg %p163
        %p323 = scmp.lt.s32.totalorder %s32, 3
        %s324 = scalar_select %p323, %s32, 3
        %s325 = scalar_lea.vmem %s6, %s324
        %p326 = pneg %p192
        %p327 = pneg %p189
        %p328 = pneg %p218
        %p329 = pneg %p215
        %p330 = scmp.lt.s32.totalorder %s31, 0
        %s331 = scalar_select %p330, %s31, 0
        %s332 = smul.addr %s331, 4
        %s333 = scalar_lea.vmem %s1, %s332
        %p334 = scmp.lt.s32.totalorder %s32, 3
        %s335 = scalar_select %p334, %s32, 3
        %p336 = scmp.lt.s32.totalorder %s31, 0
        %s337 = scalar_select %p336, %s31, 0
        %s338 = sadd.s32 %s337, %s335
        %s339 = smul.addr %s338, 8
        %s340 = scalar_lea.vmem %s2, %s339
        %p341 = scmp.lt.s32.totalorder %s32, 3
        %s342 = scalar_select %p341, %s32, 3
        %s343 = smul.addr %s342, 16
        %s344 = smul.addr %s343, 4
        %s345 = scalar_lea.vmem %s3, %s344
        %p346 = scmp.lt.s32.totalorder %s32, 3
        %s347 = scalar_select %p346, %s32, 3
        %s348 = scalar_lea.vmem %s4, %s347
        %p349 = scmp.lt.s32.totalorder %s32, 3
        %s350 = scalar_select %p349, %s32, 3
        %s351 = smul.addr %s350, 16
        %s352 = smul.addr %s351, 4
        %s353 = scalar_lea.vmem %s5, %s352
        %p354 = scmp.lt.s32.totalorder %s32, 3
        %s355 = scalar_select %p354, %s32, 3
        %s356 = scalar_lea.vmem %s6, %s355
        %p357 = scmp.eq.s32.totalorder %s32, 0
        // Predicated region
        $region45: #{moe_topk_forward.1} parent=43 // pred_check
          %p358 = pneg %p357
        $region46: #{moe_topk_forward.1} parent=43 // pred_check_branch
          %360 = sbr.rel (%p358) target = $region48
        $region47: #{moe_topk_forward.1} parent=43 // pred_region
          %361 = vst [vmem:[#allocation4] sm:$0xff] 0.0
        $region48: #{moe_topk_forward.1} parent=43 // pred_fallthru
          _
        %s362 = sshra.s32 %s32, 7
        %s363 = sand.u32 %s32, 127
        %s364 = sadd.s32 %s362, %s31
        %s365 = smul.u32 %s364, 128
        %s366 = sshra.s32 %s32, 7
        %s367 = sand.u32 %s32, 127
        %s368 = sadd.s32 %s365, %s367
        %s369 = sld [smem:[#allocation3 + %s368]]
        %p370 = scmp.gt.s32.totalorder %s369, 0
        // Predicated region
        $region49: #{moe_topk_forward.1} parent=43 // pred_check
          %p371 = pneg %p370
        $region50: #{moe_topk_forward.1} parent=43 // pred_check_branch
          %373 = sbr.rel (%p371) target = $region52
        $region51: #{moe_topk_forward.1} parent=43 // pred_region
          %v374 = vld [vmem:[%s333] sm:$0xf]
          %v375 = vld [vmem:[%s345] sm:$0xf]
          %v376 = vld [vmem:[%s345 + $0x4] sm:$0xf]
          %v377 = vld [vmem:[%s345 + $0x8] sm:$0xf]
          %v378 = vld [vmem:[%s345 + $0xc] sm:$0xf]
          %v379 = vld [vmem:[%s345 + $0x10] sm:$0xf]
          %v380 = vld [vmem:[%s345 + $0x14] sm:$0xf]
          %v381 = vld [vmem:[%s345 + $0x18] sm:$0xf]
          %v382 = vld [vmem:[%s345 + $0x1c] sm:$0xf]
          %v383 = vld [vmem:[%s345 + $0x20] sm:$0xf]
          %v384 = vld [vmem:[%s345 + $0x24] sm:$0xf]
          %v385 = vld [vmem:[%s345 + $0x28] sm:$0xf]
          %v386 = vld [vmem:[%s345 + $0x2c] sm:$0xf]
          %v387 = vld [vmem:[%s345 + $0x30] sm:$0xf]
          %v388 = vld [vmem:[%s345 + $0x34] sm:$0xf]
          %v389 = vld [vmem:[%s345 + $0x38] sm:$0xf]
          %v390 = vld [vmem:[%s345 + $0x3c] sm:$0xf]
          %v391 = vld [vmem:[%s348] sm:$0x1]
          %v393 = vperm.slane %v391, 0
          %v411 = vunpack.c.l.b16 %v375
          %v412 = vunpack.c.l.b16 %v376
          %v413 = vunpack.c.l.b16 %v377
          %v414 = vunpack.c.l.b16 %v378
          %v415 = vunpack.c.l.b16 %v379
          %v416 = vunpack.c.l.b16 %v380
          %v417 = vunpack.c.l.b16 %v381
          %v418 = vunpack.c.l.b16 %v382
          %v419 = vunpack.c.l.b16 %v383
          %v420 = vunpack.c.l.b16 %v384
          %v421 = vunpack.c.l.b16 %v385
          %v422 = vunpack.c.l.b16 %v386
          %v423 = vunpack.c.l.b16 %v387
          %v424 = vunpack.c.l.b16 %v388
          %v425 = vunpack.c.l.b16 %v389
          %v426 = vunpack.c.l.b16 %v390
          %v427 = vpack.c.b16 %v412, %v411
          %v428 = vpack.c.b16 %v414, %v413
          %v429 = vpack.c.b16 %v416, %v415
          %v430 = vpack.c.b16 %v418, %v417
          %v431 = vpack.c.b16 %v420, %v419
          %v432 = vpack.c.b16 %v422, %v421
          %v433 = vpack.c.b16 %v424, %v423
          %v434 = vpack.c.b16 %v426, %v425
          %443 = vmatpush.bf16.msra.mxu0 %v434
          %444 = vmatpush.bf16.msra.mxu0 %v433
          %445 = vmatpush.bf16.msra.mxu0 %v432
          %446 = vmatpush.bf16.msra.mxu0 %v431
          %447 = vmatpush.bf16.msra.mxu0 %v430
          %448 = vmatpush.bf16.msra.mxu0 %v429
          %449 = vmatpush.bf16.msra.mxu0 %v428
          %450 = vmatpush.bf16.msra.mxu0 %v427
          %451 = vmatmul.bf16.gmra.mxu0 %v374
          %v452 = vpop.f32.mrf.mxu0
          %v453 = vadd.f32 %v393, %v452
          %v454 = vpop.f32.mrf.mxu0
          %455 = vdwg.mxu0
          %v456 = vmax.f32 %v453, 0.0
          %v457 = vpack.c.bf16 %v456, %v456
          %v458 = vld [vmem:[%s353] sm:$0xf]
          %v459 = vld [vmem:[%s353 + $0x4] sm:$0xf]
          %v460 = vld [vmem:[%s353 + $0x8] sm:$0xf]
          %v461 = vld [vmem:[%s353 + $0xc] sm:$0xf]
          %v462 = vld [vmem:[%s353 + $0x10] sm:$0xf]
          %v463 = vld [vmem:[%s353 + $0x14] sm:$0xf]
          %v464 = vld [vmem:[%s353 + $0x18] sm:$0xf]
          %v465 = vld [vmem:[%s353 + $0x1c] sm:$0xf]
          %v466 = vld [vmem:[%s353 + $0x20] sm:$0xf]
          %v467 = vld [vmem:[%s353 + $0x24] sm:$0xf]
          %v468 = vld [vmem:[%s353 + $0x28] sm:$0xf]
          %v469 = vld [vmem:[%s353 + $0x2c] sm:$0xf]
          %v470 = vld [vmem:[%s353 + $0x30] sm:$0xf]
          %v471 = vld [vmem:[%s353 + $0x34] sm:$0xf]
          %v472 = vld [vmem:[%s353 + $0x38] sm:$0xf]
          %v473 = vld [vmem:[%s353 + $0x3c] sm:$0xf]
          %v474 = vld [vmem:[%s356] sm:$0x1]
          %v476 = vperm.slane %v474, 0
          %v494 = vunpack.c.l.b16 %v458
          %v495 = vunpack.c.l.b16 %v459
          %v496 = vunpack.c.l.b16 %v460
          %v497 = vunpack.c.l.b16 %v461
          %v498 = vunpack.c.l.b16 %v462
          %v499 = vunpack.c.l.b16 %v463
          %v500 = vunpack.c.l.b16 %v464
          %v501 = vunpack.c.l.b16 %v465
          %v502 = vunpack.c.l.b16 %v466
          %v503 = vunpack.c.l.b16 %v467
          %v504 = vunpack.c.l.b16 %v468
          %v505 = vunpack.c.l.b16 %v469
          %v506 = vunpack.c.l.b16 %v470
          %v507 = vunpack.c.l.b16 %v471
          %v508 = vunpack.c.l.b16 %v472
          %v509 = vunpack.c.l.b16 %v473
          %v510 = vpack.c.b16 %v495, %v494
          %v511 = vpack.c.b16 %v497, %v496
          %v512 = vpack.c.b16 %v499, %v498
          %v513 = vpack.c.b16 %v501, %v500
          %v514 = vpack.c.b16 %v503, %v502
          %v515 = vpack.c.b16 %v505, %v504
          %v516 = vpack.c.b16 %v507, %v506
          %v517 = vpack.c.b16 %v509, %v508
          %526 = vmatpush.bf16.msra.mxu0 %v517
          %527 = vmatpush.bf16.msra.mxu0 %v516
          %528 = vmatpush.bf16.msra.mxu0 %v515
          %529 = vmatpush.bf16.msra.mxu0 %v514
          %530 = vmatpush.bf16.msra.mxu0 %v513
          %531 = vmatpush.bf16.msra.mxu0 %v512
          %532 = vmatpush.bf16.msra.mxu0 %v511
          %533 = vmatpush.bf16.msra.mxu0 %v510
          %534 = vmatmul.bf16.gmra.mxu0 %v457
          %v535 = vpop.f32.mrf.mxu0
          %v536 = vadd.f32 %v476, %v535
          %v537 = vpop.f32.mrf.mxu0
          %538 = vdwg.mxu0
          %v539 = vld [vmem:[#allocation4] sm:$0xff]
          %v540 = vld [vmem:[%s340] sm:$0xff]
          %542 = vset.pattern.permute.xlu0 0
          %543 = vperm.xlu0 %542, %v540
          %v544 = vpop.permute.xlu0 %543
          %v546 = vmul.f32 %v544, %v536
          %v547 = vadd.f32 %v539, %v546
          %548 = vst [vmem:[#allocation4] sm:$0xff] %v547
        $region52: #{moe_topk_forward.1} parent=43 // pred_fallthru
          _
        // Predicated region
        $region53: #{moe_topk_forward.1} parent=43 // pred_check
          %p549 = pneg %p215
        $region54: #{moe_topk_forward.1} parent=43 // pred_check_branch
          %551 = sbr.rel (%p549) target = $region56
        $region55: #{moe_topk_forward.1} parent=43 // pred_region
          %553 = vsyncadd [#allocation5], 0
          %s554 = smul.addr %s31, 8
          %s555 = scalar_lea.hbm %s7, %s554
          %s557 = sshll.u32 [#allocation4], 4
          %s558 = int_to_ptr.vmem [resolvable:$true] %s557
          %s559 = sshll.u32 %s555, 4
          %s560 = int_to_ptr.hbm [resolvable:$true] %s559
          %562 = dma.vmem_to_hbm [thread:$0]  %s558, 128, %s560, [#allocation5]
        $region56: #{moe_topk_forward.1} parent=43 // pred_fallthru
          _
        // Predicated region
        $region57: #{moe_topk_forward.1} parent=43 // pred_check
          %p563 = pneg %p215
        $region58: #{moe_topk_forward.1} parent=43 // pred_check_branch
          %565 = sbr.rel (%p563) target = $region60
        $region59: #{moe_topk_forward.1} parent=43 // pred_region
          %567 = dma.done [#allocation5], 128
        $region60: #{moe_topk_forward.1} parent=43 // pred_fallthru
          _
      $region44: #{moe_topk_forward.1} parent=5 // pred_fallthru
        _
      %p568 = scmp.le.s32.totalorder 2, %s22
      // Predicated region
      $region61: #{moe_topk_forward.1} parent=5 // pred_check
        %p569 = pneg %p568
      $region62: #{moe_topk_forward.1} parent=5 // pred_check_branch
        %571 = sbr.rel (%p569) target = $region64
      $region63: #{moe_topk_forward.1} parent=5 // pred_region
        %s572 = ssub.s32 %s22, 2
      $region64: #{moe_topk_forward.1} parent=5 // pred_fallthru
        _
    $region6: #{moe_topk_forward.1} parent=1 // loop_footer
      %s26 = sadd.s32 1, %s22
    $region7: #{moe_topk_forward.1} parent=1 // loop_footer_branch
      %21 = sbr.rel target = $region3
    $region8: #{moe_topk_forward.1} parent=1 // loop_exit
      _
    %573 = vsyncpa [#allocation5], 1
    %s574 = scalar_lea.sflag [#allocation5], 1
    %575 = vsyncpa %s574, 1

</llo_original>
